<compile_context>
chip_gen: v7x
topology: tpu7x:2x2x1
jax: 0.10.0
libtpu: 0.0.40
codegen_flags: <defaults>
</compile_context>

<pallas_src>
import jax
import jax.numpy as jnp
from jax.experimental import pallas as pl
from jax.experimental.pallas import tpu as pltpu

_BN_EPS = 1e-5
_VMEM_LIMIT = 32 * 1024 * 1024


def init_params(key, feature_dim, layers):
    """Synthetic params matching MLP([2] + layers + [feature_dim]) PyTorch init."""
    channels = [2] + list(layers) + [feature_dim]
    n = len(channels)
    weights, biases, gammas, betas = [], [], [], []
    for i in range(1, n):
        c_in, c_out = channels[i - 1], channels[i]
        key, kw, kb = jax.random.split(key, 3)
        bound = 1.0 / (c_in ** 0.5)                     # Conv1d default (k=1)
        w = jax.random.uniform(kw, (c_out, c_in), jnp.float32, -bound, bound)
        if i == n - 1:
            b = jnp.zeros((c_out,), jnp.float32)        # nn.init.constant_(last.bias, 0)
        else:
            b = jax.random.uniform(kb, (c_out,), jnp.float32, -bound, bound)
        weights.append(w)
        biases.append(b)
        if i < n - 1:                                   # BatchNorm1d affine defaults
            gammas.append(jnp.ones((c_out,), jnp.float32))
            betas.append(jnp.zeros((c_out,), jnp.float32))
    return dict(weights=weights, biases=biases, bn_gamma=gammas, bn_beta=betas)


def _pick_tile(total, target):
    """Largest multiple of 128 <= target that divides `total`; else full extent."""
    if total % 128 == 0:
        t = min(total, max(128, (target // 128) * 128))
        while total % t:
            t -= 128
        return t
    return total


def _pack_params(params, mxu_dtype):
    weights = params["weights"]
    channels = [2] + [w.shape[0] for w in weights]
    num_layers = len(weights)
    num_hidden = num_layers - 1
    c_max = max(channels[1:])

    def padv(v):
        v = v.astype(jnp.float32)
        return jnp.pad(v, (0, c_max - v.shape[0]))

    # Per-channel vector table (f32): first-layer weight columns, per-hidden
    # gamma/beta, last-layer bias. Hidden conv biases are cancelled by BN.
    cols = [padv(weights[0][:, 0]), padv(weights[0][:, 1])]
    gamma_col, beta_col = {}, {}
    for i in range(num_hidden):
        gamma_col[i] = len(cols)
        cols.append(padv(params["bn_gamma"][i]))
        beta_col[i] = len(cols)
        cols.append(padv(params["bn_beta"][i]))
    last_bias_col = len(cols)
    cols.append(padv(params["biases"][-1]))
    vec_packed = jnp.stack(cols, axis=1)                # (c_max, n_cols)

    # MXU weight pack (layers 1..L-1), sublane-aligned rows, bf16 for the MXU.
    w_packed, w_row_offsets = None, []
    if num_layers >= 2:
        lane_dim = max(channels[1:num_layers])
        align = 16 if mxu_dtype == jnp.bfloat16 else 8
        blocks, off = [], 0
        for i in range(1, num_layers):
            c_out, c_in = channels[i + 1], channels[i]
            rows = -(-c_out // align) * align
            blk = jnp.zeros((rows, lane_dim), mxu_dtype)
            blk = blk.at[:c_out, :c_in].set(weights[i].astype(mxu_dtype))
            blocks.append(blk)
            w_row_offsets.append(off)
            off += rows
        w_packed = jnp.concatenate(blocks, axis=0)

    return (channels, c_max, vec_packed, gamma_col, beta_col, last_bias_col,
            w_packed, w_row_offsets)


def _preact(x, upto, w_ref, vec_ref, ss_refs, channels, w_row_offsets, mxu_dtype):
    """Bias-less pre-activation of conv layer `upto` from a (2, tile) f32 input."""
    c1 = channels[1]
    # Layer 0 (C_in = 2): two VPU broadcast FMAs; raw coordinates stay f32.
    h = vec_ref[0:c1, 0:1] * x[0:1, :] + vec_ref[0:c1, 1:2] * x[1:2, :]
    for i in range(1, upto + 1):
        c_in, c_out = channels[i], channels[i + 1]
        scale = ss_refs[i - 1][0:c_in, 0:1]
        shift = ss_refs[i - 1][0:c_in, 1:2]
        a = jnp.maximum(h * scale + shift, 0.0)          # fused folded-BN + ReLU
        r0 = w_row_offsets[i - 1]
        w = w_ref[r0:r0 + c_out, 0:c_in]                  # bf16 MXU operands,
        h = jnp.dot(w, a.astype(mxu_dtype),               # f32 accumulation
                    preferred_element_type=jnp.float32)
    return h


def _make_stats_kernel(channels, s, w_row_offsets, gamma_col, beta_col,
                       m_total, tm, mxu_dtype, has_w):
    """Stats sweep for hidden layer s: running Chan combine of per-channel
    (mean, M2) over M-tiles, finalized into folded BN (scale, shift)."""
    c_out = channels[s + 1]
    inv_m = 1.0 / float(m_total)
    tm_f = float(tm)

    def kernel(*refs):
        idx = 0
        x_ref = refs[idx]; idx += 1
        w_ref = None
        if has_w:
            w_ref = refs[idx]; idx += 1
        vec_ref = refs[idx]; idx += 1
        prior_ss = refs[idx:idx + s]; idx += s
        out_ref = refs[idx]; idx += 1
        stat_ref = refs[idx]

        t = pl.program_id(0)
        num_t = pl.num_programs(0)

        @pl.when(t == 0)
        def _():
            stat_ref[...] = jnp.zeros_like(stat_ref)

        x = x_ref[...].astype(jnp.float32)
        h = _preact(x, s, w_ref, vec_ref, prior_ss, channels, w_row_offsets,
                    mxu_dtype)                            # (c_out, tm) f32

        # Chan parallel-variance combine (robust vs. E[h^2]-mean^2 cancellation).
        n_prev = (t * tm).astype(jnp.float32)
        m_t = jnp.sum(h, axis=1, keepdims=True) * (1.0 / tm_f)
        d = h - m_t
        m2_t = jnp.sum(d * d, axis=1, keepdims=True)
        mean_prev = stat_ref[0:c_out, 0:1]
        m2_prev = stat_ref[0:c_out, 1:2]
        n_new = n_prev + tm_f
        delta = m_t - mean_prev
        mean_new = mean_prev + delta * (tm_f / n_new)
        m2_new = m2_prev + m2_t + delta * delta * (n_prev * tm_f / n_new)
        stat_ref[0:c_out, 0:1] = mean_new
        stat_ref[0:c_out, 1:2] = m2_new

        @pl.when(t == num_t - 1)
        def _():
            var = m2_new * inv_m                          # biased var (training BN)
            g = vec_ref[0:c_out, gamma_col[s]:gamma_col[s] + 1]
            be = vec_ref[0:c_out, beta_col[s]:beta_col[s] + 1]
            scale = g * jax.lax.rsqrt(var + _BN_EPS)
            shift = be - mean_new * scale
            out_ref[...] = jnp.zeros_like(out_ref)
            out_ref[0:c_out, 0:1] = scale
            out_ref[0:c_out, 1:2] = shift

    return kernel


def _make_output_kernel(channels, w_row_offsets, last_bias_col, mxu_dtype,
                        has_w, num_hidden):
    num_layers = len(channels) - 1
    c_out = channels[-1]

    def kernel(*refs):
        idx = 0
        x_ref = refs[idx]; idx += 1
        w_ref = None
        if has_w:
            w_ref = refs[idx]; idx += 1
        vec_ref = refs[idx]; idx += 1
        ss_refs = refs[idx:idx + num_hidden]; idx += num_hidden
        out_ref = refs[idx]

        x = x_ref[...].astype(jnp.float32)
        h = _preact(x, num_layers - 1, w_ref, vec_ref, ss_refs, channels,
                    w_row_offsets, mxu_dtype)
        h = h + vec_ref[0:c_out, last_bias_col:last_bias_col + 1]
        out_ref[...] = h.astype(out_ref.dtype)            # lane-dense, unmasked vst

    return kernel


def keypoint_encoder_forward(kpts, params, *, out_dtype=jnp.float32,
                             mxu_dtype=jnp.bfloat16, m_tile=1024, n_tile=512,
                             kpts_channel_first=False):
    """kpts: (B, N, 2) (or (B, 2, N) if kpts_channel_first) -> (B, feature_dim, N)."""
    if kpts_channel_first:
        B, two, N = kpts.shape
        x = jnp.transpose(kpts.astype(jnp.float32), (1, 0, 2)).reshape(2, B * N)
    else:
        # TODO(synk): fuse this (B,N,2)->(2,M) transpose into the producer.
        B, N, two = kpts.shape
        x = jnp.transpose(kpts.astype(jnp.float32), (2, 0, 1)).reshape(2, B * N)
    assert two == 2
    M = B * N

    (channels, c_max, vec_packed, gamma_col, beta_col, last_bias_col,
     w_packed, w_row_offsets) = _pack_params(params, mxu_dtype)
    num_layers = len(channels) - 1
    num_hidden = num_layers - 1
    feature_dim = channels[-1]
    has_w = w_packed is not None

    def static_inputs():
        ins = [w_packed] if has_w else []
        return ins + [vec_packed]

    # ---- stats sweeps: one per hidden layer (sequential M-tiles, tiny output) ----
    tm = _pick_tile(M, m_tile)
    num_m_tiles = M // tm
    const1 = lambda t: (0, 0)
    ss_list = []
    for s in range(num_hidden):
        inputs = [x] + static_inputs() + ss_list
        in_specs = [pl.BlockSpec((2, tm), lambda t: (0, t))]
        if has_w:
            in_specs.append(pl.BlockSpec(w_packed.shape, const1))
        in_specs.append(pl.BlockSpec(vec_packed.shape, const1))
        in_specs += [pl.BlockSpec((c_max, 2), const1) for _ in range(s)]
        ss = pl.pallas_call(
            _make_stats_kernel(channels, s, w_row_offsets, gamma_col, beta_col,
                               M, tm, mxu_dtype, has_w),
            out_shape=jax.ShapeDtypeStruct((c_max, 2), jnp.float32),
            grid=(num_m_tiles,),
            in_specs=in_specs,
            out_specs=pl.BlockSpec((c_max, 2), const1),
            scratch_shapes=[pltpu.VMEM((c_max, 2), jnp.float32)],
            compiler_params=pltpu.CompilerParams(
                dimension_semantics=("arbitrary",),
                vmem_limit_bytes=_VMEM_LIMIT),
        )(*inputs)
        ss_list.append(ss)

    # ---- output sweep: parallel tiles, writes (B, feature_dim, N) directly ----
    out_kernel = _make_output_kernel(channels, w_row_offsets, last_bias_col,
                                     mxu_dtype, has_w, num_hidden)
    inputs = [x] + static_inputs() + ss_list
    const2 = lambda b, j: (0, 0)

    direct_bcn = (N % 128 == 0) or (B == 1)
    if direct_bcn:
        tn = _pick_tile(N, n_tile)
        nt = N // tn
        grid = (B, nt)
        x_spec = pl.BlockSpec((2, tn), lambda b, j: (0, b * nt + j))
        out_shape = jax.ShapeDtypeStruct((B, feature_dim, N), out_dtype)
        out_specs = pl.BlockSpec((None, feature_dim, tn), lambda b, j: (b, 0, j))
    else:
        # N not lane-aligned and B > 1: keep the lane-flattened M layout (avoids
        # masked partial stores) and do a cheap leading-axis reshuffle outside.
        grid = (1, num_m_tiles)
        x_spec = pl.BlockSpec((2, tm), lambda b, j: (0, j))
        out_shape = jax.ShapeDtypeStruct((feature_dim, M), out_dtype)
        out_specs = pl.BlockSpec((feature_dim, tm), lambda b, j: (0, j))

    in_specs = [x_spec]
    if has_w:
        in_specs.append(pl.BlockSpec(w_packed.shape, const2))
    in_specs.append(pl.BlockSpec(vec_packed.shape, const2))
    in_specs += [pl.BlockSpec((c_max, 2), const2) for _ in range(num_hidden)]

    out = pl.pallas_call(
        out_kernel,
        out_shape=out_shape,
        grid=grid,
        in_specs=in_specs,
        out_specs=out_specs,
        compiler_params=pltpu.CompilerParams(
            dimension_semantics=("parallel", "parallel"),
            vmem_limit_bytes=_VMEM_LIMIT),
    )(*inputs)

    if direct_bcn:
        return out
    return out.reshape(feature_dim, B, N).transpose(1, 0, 2)


def reference_forward(kpts, params):
    """Pure-JAX f32 reference mirroring the PyTorch forward (training-mode BN,
    hidden biases included, two-pass variance)."""
    B, N, _ = kpts.shape
    h = jnp.transpose(kpts.astype(jnp.float32), (2, 0, 1)).reshape(2, B * N)
    nl = len(params["weights"])
    for i in range(nl):
        W = params["weights"][i]
        b = params["biases"][i]
        h = W @ h + b[:, None]
        if i < nl - 1:
            mean = jnp.mean(h, axis=1, keepdims=True)
            var = jnp.mean((h - mean) ** 2, axis=1, keepdims=True)
            h = (h - mean) / jnp.sqrt(var + _BN_EPS)
            h = h * params["bn_gamma"][i][:, None] + params["bn_beta"][i][:, None]
            h = jnp.maximum(h, 0.0)
    C = h.shape[0]
    return h.reshape(C, B, N).transpose(1, 0, 2)


if __name__ == "__main__":
    key = jax.random.PRNGKey(0)
    B, N = 2, 128                      # N multiple of 128 -> direct (B, C, N) stores
    feature_dim = 32
    layers = [32, 64]                  # MLP channels: [2, 32, 64, 32]

    k_kpts, k_params = jax.random.split(key)
    kpts = jax.random.normal(k_kpts, (B, N, 2), jnp.float32)
    params = init_params(k_params, feature_dim, layers)

    # m_tile=128 exercises the multi-tile Chan stats combine at this small size.
    out = keypoint_encoder_forward(kpts, params, m_tile=128, n_tile=128)
    out = jax.block_until_ready(out)

    ref = reference_forward(kpts, params)
    assert out.shape == (B, feature_dim, N), out.shape
    # bf16 MXU operands (f32 accumulation) => ~1e-2-scale deviations from the
    # pure-f32 reference are expected and benign after BN renormalization.
    err = float(jnp.max(jnp.abs(out - ref)))
    assert jnp.allclose(out, ref, atol=5e-2, rtol=5e-2), err

    print("KERNEL_OK")
</pallas_src>

<mosaic_0001>
module attributes {stable_mosaic.version = 11 : i64} {
  func.func @kernel(%arg0: i32, %arg1: memref<2x128xf32, #tpu.memory_space<vmem>>, %arg2: memref<96x64xbf16, #tpu.memory_space<vmem>>, %arg3: memref<64x7xf32, #tpu.memory_space<vmem>>, %arg4: memref<64x2xf32, #tpu.memory_space<vmem>>, %arg5: memref<64x2xf32, #tpu.memory_space<vmem>>) attributes {dimension_semantics = [#tpu.dimension_semantics<arbitrary>], iteration_bounds = array<i64: 2>, scalar_prefetch = 0 : i64, scratch_operands = 1 : i64, tpu.core_type = #tpu.core_type<tc>, window_params = [{transform_indices = @transform_0, window_bounds = array<i64: 2, 128>}, {pipeline_mode = #tpu.pipeline_mode<synchronous>, transform_indices = @transform_1, window_bounds = array<i64: 96, 64>}, {pipeline_mode = #tpu.pipeline_mode<synchronous>, transform_indices = @transform_2, window_bounds = array<i64: 64, 7>}, {pipeline_mode = #tpu.pipeline_mode<synchronous>, transform_indices = @transform_3, window_bounds = array<i64: 64, 2>}]} {
    %c0_i32 = arith.constant 0 : i32
    %0 = arith.cmpi eq, %arg0, %c0_i32 : i32
    %1 = arith.extui %0 : i1 to i32
    %c0_i32_0 = arith.constant 0 : i32
    %2 = arith.cmpi ne, %1, %c0_i32_0 : i32
    scf.if %2 {
      %cst_19 = arith.constant 0.000000e+00 : f32
      %46 = vector.broadcast %cst_19 : f32 to vector<64x2xf32>
      %c0_20 = arith.constant 0 : index
      %c0_21 = arith.constant 0 : index
      %47 = vector.load %arg5[%c0_20, %c0_21] : memref<64x2xf32, #tpu.memory_space<vmem>>, vector<64x2xf32>
      tpu.vector_store %arg5[%c0_20, %c0_21], %46 {strides = array<i32>} : memref<64x2xf32, #tpu.memory_space<vmem>>, vector<64x2xf32>,
    } else {
    }
    %c0 = arith.constant 0 : index
    %c0_1 = arith.constant 0 : index
    %3 = vector.load %arg1[%c0, %c0_1] : memref<2x128xf32, #tpu.memory_space<vmem>>, vector<2x128xf32>
    %c0_2 = arith.constant 0 : index
    %c0_3 = arith.constant 0 : index
    %4 = vector.load %arg3[%c0_2, %c0_3] : memref<64x7xf32, #tpu.memory_space<vmem>>, vector<32x1xf32>
    %5 = vector.extract_strided_slice %3 {offsets = [0, 0], sizes = [1, 128], strides = [1, 1]} : vector<2x128xf32> to vector<1x128xf32>
    %6 = vector.broadcast %4 : vector<32x1xf32> to vector<32x128xf32>
    %7 = vector.broadcast %5 : vector<1x128xf32> to vector<32x128xf32>
    %8 = arith.mulf %6, %7 : vector<32x128xf32>
    %c0_4 = arith.constant 0 : index
    %c1 = arith.constant 1 : index
    %9 = vector.load %arg3[%c0_4, %c1] : memref<64x7xf32, #tpu.memory_space<vmem>>, vector<32x1xf32>
    %10 = vector.extract_strided_slice %3 {offsets = [1, 0], sizes = [1, 128], strides = [1, 1]} : vector<2x128xf32> to vector<1x128xf32>
    %11 = vector.broadcast %9 : vector<32x1xf32> to vector<32x128xf32>
    %12 = vector.broadcast %10 : vector<1x128xf32> to vector<32x128xf32>
    %13 = arith.mulf %11, %12 : vector<32x128xf32>
    %14 = arith.addf %8, %13 : vector<32x128xf32>
    %c128_i32 = arith.constant 128 : i32
    %15 = arith.muli %arg0, %c128_i32 : i32
    %16 = arith.sitofp %15 : i32 to f32
    %cst = arith.constant dense<0.000000e+00> : vector<32xf32>
    %17 = vector.multi_reduction <add>, %14, %cst [1] : vector<32x128xf32> to vector<32xf32>
    %18 = vector.shape_cast %17 : vector<32xf32> to vector<32x1xf32>
    %cst_5 = arith.constant 7.812500e-03 : f32
    %19 = vector.broadcast %cst_5 : f32 to vector<32x1xf32>
    %20 = arith.mulf %18, %19 : vector<32x1xf32>
    %21 = vector.broadcast %20 : vector<32x1xf32> to vector<32x128xf32>
    %22 = arith.subf %14, %21 : vector<32x128xf32>
    %23 = arith.mulf %22, %22 : vector<32x128xf32>
    %cst_6 = arith.constant dense<0.000000e+00> : vector<32xf32>
    %24 = vector.multi_reduction <add>, %23, %cst_6 [1] : vector<32x128xf32> to vector<32xf32>
    %25 = vector.shape_cast %24 : vector<32xf32> to vector<32x1xf32>
    %c0_7 = arith.constant 0 : index
    %c0_8 = arith.constant 0 : index
    %26 = vector.load %arg5[%c0_7, %c0_8] : memref<64x2xf32, #tpu.memory_space<vmem>>, vector<32x1xf32>
    %c0_9 = arith.constant 0 : index
    %c1_10 = arith.constant 1 : index
    %27 = vector.load %arg5[%c0_9, %c1_10] : memref<64x2xf32, #tpu.memory_space<vmem>>, vector<32x1xf32>
    %cst_11 = arith.constant 1.280000e+02 : f32
    %28 = arith.addf %16, %cst_11 : f32
    %29 = arith.subf %20, %26 : vector<32x1xf32>
    %cst_12 = arith.constant 1.280000e+02 : f32
    %30 = arith.divf %cst_12, %28 : f32
    %31 = vector.broadcast %30 : f32 to vector<32x1xf32>
    %32 = arith.mulf %29, %31 : vector<32x1xf32>
    %33 = arith.addf %26, %32 : vector<32x1xf32>
    %34 = arith.addf %27, %25 : vector<32x1xf32>
    %35 = arith.mulf %29, %29 : vector<32x1xf32>
    %cst_13 = arith.constant 1.280000e+02 : f32
    %36 = arith.mulf %16, %cst_13 : f32
    %37 = arith.divf %36, %28 : f32
    %38 = vector.broadcast %37 : f32 to vector<32x1xf32>
    %39 = arith.mulf %35, %38 : vector<32x1xf32>
    %40 = arith.addf %34, %39 : vector<32x1xf32>
    %c0_14 = arith.constant 0 : index
    %c0_15 = arith.constant 0 : index
    %41 = vector.load %arg5[%c0_14, %c0_15] : memref<64x2xf32, #tpu.memory_space<vmem>>, vector<32x1xf32>
    tpu.vector_store %arg5[%c0_14, %c0_15], %33 {strides = array<i32>} : memref<64x2xf32, #tpu.memory_space<vmem>>, vector<32x1xf32>,
    %c0_16 = arith.constant 0 : index
    %c1_17 = arith.constant 1 : index
    %42 = vector.load %arg5[%c0_16, %c1_17] : memref<64x2xf32, #tpu.memory_space<vmem>>, vector<32x1xf32>
    tpu.vector_store %arg5[%c0_16, %c1_17], %40 {strides = array<i32>} : memref<64x2xf32, #tpu.memory_space<vmem>>, vector<32x1xf32>,
    %c1_i32 = arith.constant 1 : i32
    %43 = arith.cmpi eq, %arg0, %c1_i32 : i32
    %44 = arith.extui %43 : i1 to i32
    %c0_i32_18 = arith.constant 0 : i32
    %45 = arith.cmpi ne, %44, %c0_i32_18 : i32
    scf.if %45 {
      %cst_19 = arith.constant 3.906250e-03 : f32
      %46 = vector.broadcast %cst_19 : f32 to vector<32x1xf32>
      %47 = arith.mulf %40, %46 : vector<32x1xf32>
      %c0_20 = arith.constant 0 : index
      %c2 = arith.constant 2 : index
      %48 = vector.load %arg3[%c0_20, %c2] : memref<64x7xf32, #tpu.memory_space<vmem>>, vector<32x1xf32>
      %c0_21 = arith.constant 0 : index
      %c3 = arith.constant 3 : index
      %49 = vector.load %arg3[%c0_21, %c3] : memref<64x7xf32, #tpu.memory_space<vmem>>, vector<32x1xf32>
      %cst_22 = arith.constant 9.99999974E-6 : f32
      %50 = vector.broadcast %cst_22 : f32 to vector<32x1xf32>
      %51 = arith.addf %47, %50 : vector<32x1xf32>
      %52 = math.rsqrt %51 : vector<32x1xf32>
      %53 = arith.mulf %48, %52 : vector<32x1xf32>
      %54 = arith.mulf %33, %53 : vector<32x1xf32>
      %55 = arith.subf %49, %54 : vector<32x1xf32>
      %cst_23 = arith.constant 0.000000e+00 : f32
      %56 = vector.broadcast %cst_23 : f32 to vector<64x2xf32>
      %c0_24 = arith.constant 0 : index
      %c0_25 = arith.constant 0 : index
      %57 = vector.load %arg4[%c0_24, %c0_25] : memref<64x2xf32, #tpu.memory_space<vmem>>, vector<64x2xf32>
      tpu.vector_store %arg4[%c0_24, %c0_25], %56 {strides = array<i32>} : memref<64x2xf32, #tpu.memory_space<vmem>>, vector<64x2xf32>,
      %c0_26 = arith.constant 0 : index
      %c0_27 = arith.constant 0 : index
      %58 = vector.load %arg4[%c0_26, %c0_27] : memref<64x2xf32, #tpu.memory_space<vmem>>, vector<32x1xf32>
      tpu.vector_store %arg4[%c0_26, %c0_27], %53 {strides = array<i32>} : memref<64x2xf32, #tpu.memory_space<vmem>>, vector<32x1xf32>,
      %c0_28 = arith.constant 0 : index
      %c1_29 = arith.constant 1 : index
      %59 = vector.load %arg4[%c0_28, %c1_29] : memref<64x2xf32, #tpu.memory_space<vmem>>, vector<32x1xf32>
      tpu.vector_store %arg4[%c0_28, %c1_29], %55 {strides = array<i32>} : memref<64x2xf32, #tpu.memory_space<vmem>>, vector<32x1xf32>,
    } else {
    }
    return
  }
  func.func @transform_0(%arg0: i32) -> (i32, i32) {
    %c0_i32 = arith.constant 0 : i32
    %c0_i32_0 = arith.constant 0 : i32
    return %c0_i32, %arg0 : i32, i32
  }
  func.func @transform_1(%arg0: i32) -> (i32, i32) {
    %c0_i32 = arith.constant 0 : i32
    %c0_i32_0 = arith.constant 0 : i32
    %c0_i32_1 = arith.constant 0 : i32
    return %c0_i32, %c0_i32_0 : i32, i32
  }
  func.func @transform_2(%arg0: i32) -> (i32, i32) {
    %c0_i32 = arith.constant 0 : i32
    %c0_i32_0 = arith.constant 0 : i32
    %c0_i32_1 = arith.constant 0 : i32
    return %c0_i32, %c0_i32_0 : i32, i32
  }
  func.func @transform_3(%arg0: i32) -> (i32, i32) {
    %c0_i32 = arith.constant 0 : i32
    %c0_i32_0 = arith.constant 0 : i32
    %c0_i32_1 = arith.constant 0 : i32
    return %c0_i32, %c0_i32_0 : i32, i32
  }
}

</mosaic_0001>

<llo_original>
// kernel: tpu_custom_call.1
$region0: #{tpu_custom_call.1}
  #allocation0 [shape = 'u32[]', space=smem, size = 0x4, offset = 0x4, fixed_abs, tag = 'smem constant byte address 0x4 - core index']
  #allocation1 [shape = 'u32[144,128]{1,0:T(1,128)}', space=vmem, size = 0x12000, scoped, tag = 'internal scratch']
  #allocation2 [shape = 'f32[64,2]{1,0:T(8,128)}', space=vmem, size = 0x8000, scoped, tag = 'scratch operand']
  %s0 = inlined_call_operand.vmem [shape: f32[2,256], index: 0, kind: input, shape index: {}]
  %s1 = inlined_call_operand.vmem [shape: bf16[96,64], index: 1, kind: input, shape index: {}]
  %s2 = inlined_call_operand.vmem [shape: f32[64,7], index: 2, kind: input, shape index: {}]
  %s3 = inlined_call_operand.vmem [shape: f32[64,2], index: 3, kind: output, shape index: {}]
  %s4 = sld [smem:[#allocation0]]
  $region53: #{tpu_custom_call.1} parent=0
    _
  %s6 = ssub.s32 1, %s4
  %s7 = scalar_select 0, %s6, %s4
  loop: start=0, step=1, limit=4
  $region2: #{tpu_custom_call.1} parent=0 // loop_pre_header
    _
  $region3: #{tpu_custom_call.1} parent=0 // loop_header
    %s9 = sphi 0, %s13
    %p10 = scmp.ge.s32.totalorder %s9, 4
    %s19 = sphi 0, %s21
    %s22 = sphi 0, %s19
    %s23 = sphi 0, %s22
    %s39 = sphi 0, %s23
    %s43 = sphi 0, %s43
    %s45 = sphi 0, %s43
    %s46 = sphi 0, %s45
    %s60 = sphi 0, %s46
    %s64 = sphi 0, %s64
    %s66 = sphi 0, %s64
    %s67 = sphi 0, %s66
    %s81 = sphi 0, %s67
    %s85 = sphi 0, %s85
    %s87 = sphi 0, %s85
    %s88 = sphi 0, %s87
    %s102 = sphi 0, %s88
  $region4: #{tpu_custom_call.1} parent=0 // loop_header_branch
    %12 = sbr.rel (%p10) target = $region8
  $region5: #{tpu_custom_call.1} parent=0 // loop_body
    %s14 = ssub.s32 %s9, 1
    %s15 = ssub.s32 %s9, 2
    %s16 = sadd.s32 %s9, 1
    %s17 = ssub.s32 %s9, %s16
    %p18 = scmp.eq.s32.totalorder %s17, 0
    %s20 = sadd.s32 %s19, 1
    %s21 = scalar_select %p18, %s19, %s20
    %p24 = pneg %p18
    %p25 = scmp.eq.s32.totalorder %s9, 1
    %p26 = por %p24, %p25
    %p27 = scmp.ne.s32.totalorder %s19, %s22
    %p28 = scmp.eq.s32.totalorder %s9, 0
    %p29 = por %p27, %p28
    %p30 = scmp.ne.s32.totalorder %s19, %s22
    %p31 = scmp.eq.s32.totalorder %s14, 1
    %p32 = por %p30, %p31
    %p33 = scmp.ne.s32.totalorder %s22, %s23
    %p34 = scmp.eq.s32.totalorder %s14, 0
    %p35 = por %p33, %p34
    %p36 = scmp.ne.s32.totalorder %s22, %s23
    %p37 = scmp.eq.s32.totalorder %s15, 1
    %p38 = por %p36, %p37
    %p40 = scmp.ne.s32.totalorder %s23, %s39
    %p41 = scmp.eq.s32.totalorder %s15, 0
    %p42 = por %p40, %p41
    %s44 = sadd.s32 %s43, 1
    %p47 = scmp.eq.s32.totalorder %s9, 1
    %p48 = scmp.ne.s32.totalorder %s43, %s45
    %p49 = scmp.eq.s32.totalorder %s9, 0
    %p50 = por %p48, %p49
    %p51 = scmp.ne.s32.totalorder %s43, %s45
    %p52 = scmp.eq.s32.totalorder %s14, 1
    %p53 = por %p51, %p52
    %p54 = scmp.ne.s32.totalorder %s45, %s46
    %p55 = scmp.eq.s32.totalorder %s14, 0
    %p56 = por %p54, %p55
    %p57 = scmp.ne.s32.totalorder %s45, %s46
    %p58 = scmp.eq.s32.totalorder %s15, 1
    %p59 = por %p57, %p58
    %p61 = scmp.ne.s32.totalorder %s46, %s60
    %p62 = scmp.eq.s32.totalorder %s15, 0
    %p63 = por %p61, %p62
    %s65 = sadd.s32 %s64, 1
    %p68 = scmp.eq.s32.totalorder %s9, 1
    %p69 = scmp.ne.s32.totalorder %s64, %s66
    %p70 = scmp.eq.s32.totalorder %s9, 0
    %p71 = por %p69, %p70
    %p72 = scmp.ne.s32.totalorder %s64, %s66
    %p73 = scmp.eq.s32.totalorder %s14, 1
    %p74 = por %p72, %p73
    %p75 = scmp.ne.s32.totalorder %s66, %s67
    %p76 = scmp.eq.s32.totalorder %s14, 0
    %p77 = por %p75, %p76
    %p78 = scmp.ne.s32.totalorder %s66, %s67
    %p79 = scmp.eq.s32.totalorder %s15, 1
    %p80 = por %p78, %p79
    %p82 = scmp.ne.s32.totalorder %s67, %s81
    %p83 = scmp.eq.s32.totalorder %s15, 0
    %p84 = por %p82, %p83
    %s86 = sadd.s32 %s85, 1
    %p89 = scmp.eq.s32.totalorder %s9, 1
    %p90 = scmp.ne.s32.totalorder %s85, %s87
    %p91 = scmp.eq.s32.totalorder %s9, 0
    %p92 = por %p90, %p91
    %p93 = scmp.ne.s32.totalorder %s85, %s87
    %p94 = scmp.eq.s32.totalorder %s14, 1
    %p95 = por %p93, %p94
    %p96 = scmp.ne.s32.totalorder %s87, %s88
    %p97 = scmp.eq.s32.totalorder %s14, 0
    %p98 = por %p96, %p97
    %p99 = scmp.ne.s32.totalorder %s87, %s88
    %p100 = scmp.eq.s32.totalorder %s15, 1
    %p101 = por %p99, %p100
    %p103 = scmp.ne.s32.totalorder %s88, %s102
    %p104 = scmp.eq.s32.totalorder %s15, 0
    %p105 = por %p103, %p104
    %p106 = scmp.le.s32.totalorder 1, %s9
    %p107 = scmp.lt.s32.totalorder %s9, 3
    %p108 = pnand %p106, %p107
    %p109 = pneg %p108
    // Predicated region
    $region9: #{tpu_custom_call.1} parent=5 // pred_check
      _
    $region10: #{tpu_custom_call.1} parent=5 // pred_check_branch
      %111 = sbr.rel (%p108) target = $region12
    $region11: #{tpu_custom_call.1} parent=5 // pred_region
      %s112 = ssub.s32 %s9, 1
      // Predicated region
      $region13: #{tpu_custom_call.1} parent=11 // pred_check
        %p113 = pneg %p56
      $region14: #{tpu_custom_call.1} parent=11 // pred_check_branch
        %115 = sbr.rel (%p113) target = $region16
      $region15: #{tpu_custom_call.1} parent=11 // pred_region
        _
      $region16: #{tpu_custom_call.1} parent=11 // pred_fallthru
        _
      // Predicated region
      $region17: #{tpu_custom_call.1} parent=11 // pred_check
        %p116 = pneg %p77
      $region18: #{tpu_custom_call.1} parent=11 // pred_check_branch
        %118 = sbr.rel (%p116) target = $region20
      $region19: #{tpu_custom_call.1} parent=11 // pred_region
        _
      $region20: #{tpu_custom_call.1} parent=11 // pred_fallthru
        _
    $region12: #{tpu_custom_call.1} parent=5 // pred_fallthru
      _
    %p119 = scmp.lt.s32.totalorder %s9, 2
    // Predicated region
    $region21: #{tpu_custom_call.1} parent=5 // pred_check
      %p120 = pneg %p119
    $region22: #{tpu_custom_call.1} parent=5 // pred_check_branch
      %122 = sbr.rel (%p120) target = $region24
    $region23: #{tpu_custom_call.1} parent=5 // pred_region
      // Predicated region
      $region25: #{tpu_custom_call.1} parent=23 // pred_check
        %p123 = pneg %p29
      $region26: #{tpu_custom_call.1} parent=23 // pred_check_branch
        %125 = sbr.rel (%p123) target = $region28
      $region27: #{tpu_custom_call.1} parent=23 // pred_region
        %p126 = scmp.lt.s32.totalorder %s9, 1
        %s127 = scalar_select %p126, %s9, 1
        %s128 = smul.addr %s127, 2
        %s129 = scalar_lea.vmem %s0, %s128
      $region28: #{tpu_custom_call.1} parent=23 // pred_fallthru
        _
    $region24: #{tpu_custom_call.1} parent=5 // pred_fallthru
      _
    %p130 = scmp.le.s32.totalorder 1, %s9
    %p131 = scmp.lt.s32.totalorder %s9, 3
    %p132 = pnand %p130, %p131
    %p133 = pneg %p132
    // Predicated region
    $region29: #{tpu_custom_call.1} parent=5 // pred_check
      _
    $region30: #{tpu_custom_call.1} parent=5 // pred_check_branch
      %135 = sbr.rel (%p132) target = $region32
    $region31: #{tpu_custom_call.1} parent=5 // pred_region
      %s136 = ssub.s32 %s9, 1
      %p137 = scmp.lt.s32.totalorder %s14, 1
      %s138 = scalar_select %p137, %s14, 1
      %s139 = smul.addr %s138, 2
      %s140 = scalar_lea.vmem %s0, %s139
      %p141 = pneg %p35
      %p142 = pneg %p32
      %p143 = pneg %p56
      %p144 = pneg %p53
      %p145 = pneg %p77
      %p146 = pneg %p74
      %p147 = pneg %p98
      %p148 = pneg %p95
      %p149 = scmp.lt.s32.totalorder %s14, 1
      %s150 = scalar_select %p149, %s14, 1
      %s151 = smul.addr %s150, 2
      %s152 = scalar_lea.vmem %s0, %s151
      %p153 = scmp.eq.s32.totalorder %s14, 0
      // Predicated region
      $region33: #{tpu_custom_call.1} parent=31 // pred_check
        %p154 = pneg %p153
      $region34: #{tpu_custom_call.1} parent=31 // pred_check_branch
        %156 = sbr.rel (%p154) target = $region36
      $region35: #{tpu_custom_call.1} parent=31 // pred_region
        %vm157 = vcmask 15360
        %158 = vst.msk [vmem:[#allocation2] sm:$0xff] %vm157, 0.0
        %159 = vst.msk [vmem:[#allocation2 + $0x8] sm:$0xff] %vm157, 0.0
        %160 = vst.msk [vmem:[#allocation2 + $0x10] sm:$0xff] %vm157, 0.0
        %161 = vst.msk [vmem:[#allocation2 + $0x18] sm:$0xff] %vm157, 0.0
        %162 = vst.msk [vmem:[#allocation2 + $0x20] sm:$0xff] %vm157, 0.0
        %163 = vst.msk [vmem:[#allocation2 + $0x28] sm:$0xff] %vm157, 0.0
        %164 = vst.msk [vmem:[#allocation2 + $0x30] sm:$0xff] %vm157, 0.0
        %165 = vst.msk [vmem:[#allocation2 + $0x38] sm:$0xff] %vm157, 0.0
      $region36: #{tpu_custom_call.1} parent=31 // pred_fallthru
        _
      %v166 = vld [vmem:[%s152] sm:$0x3]
      %v167 = vld [vmem:[%s2] sm:$0xff]
      %v168 = vld [vmem:[%s2 + $0x8] sm:$0xff]
      %v169 = vld [vmem:[%s2 + $0x10] sm:$0xff]
      %v170 = vld [vmem:[%s2 + $0x18] sm:$0xff]
      %172 = vset.pattern.permute.xlu0 0
      %173 = vperm.xlu0 %172, %v167
      %v174 = vpop.permute.xlu0 %173
      %177 = vset.pattern.permute.xlu0 0
      %178 = vperm.xlu0 %177, %v168
      %v179 = vpop.permute.xlu0 %178
      %182 = vset.pattern.permute.xlu0 0
      %183 = vperm.xlu0 %182, %v169
      %v184 = vpop.permute.xlu0 %183
      %187 = vset.pattern.permute.xlu0 0
      %188 = vperm.xlu0 %187, %v170
      %v189 = vpop.permute.xlu0 %188
      %v191 = vlaneseq
      %v192 = vshrl.u32 %v191, 7
      %v193 = vsub.s32 0, %v192
      %v194 = vrot.slane %v166, %v193
      %v195 = vmul.f32 %v174, %v194
      %v196 = vmul.f32 %v179, %v194
      %v197 = vmul.f32 %v184, %v194
      %v198 = vmul.f32 %v189, %v194
      %199 = vset.pattern.permute.xlu0 1
      %200 = vperm.xlu0 %199, %v167
      %v201 = vpop.permute.xlu0 %200
      %203 = vset.pattern.permute.xlu0 1
      %204 = vperm.xlu0 %203, %v168
      %v205 = vpop.permute.xlu0 %204
      %207 = vset.pattern.permute.xlu0 1
      %208 = vperm.xlu0 %207, %v169
      %v209 = vpop.permute.xlu0 %208
      %211 = vset.pattern.permute.xlu0 1
      %212 = vperm.xlu0 %211, %v170
      %v213 = vpop.permute.xlu0 %212
      %v215 = vlaneseq
      %v216 = vshrl.u32 %v215, 7
      %v217 = vsub.s32 1, %v216
      %v218 = vrot.slane %v166, %v217
      %v219 = vmul.f32 %v201, %v218
      %v220 = vmul.f32 %v205, %v218
      %v221 = vmul.f32 %v209, %v218
      %v222 = vmul.f32 %v213, %v218
      %v223 = vadd.f32 %v195, %v219
      %v224 = vadd.f32 %v196, %v220
      %v225 = vadd.f32 %v197, %v221
      %v226 = vadd.f32 %v198, %v222
      %s227 = smul.u32 %s14, 128
      %s228 = scvt.s32.f32 %s227
      %229 = vadd.xlane.f32.xlu0 %v223
      %v230 = vpop.xlane.xlu0 %229
      %231 = vadd.xlane.f32.xlu0 %v224
      %v232 = vpop.xlane.xlu0 %231
      %233 = vadd.xlane.f32.xlu0 %v225
      %v234 = vpop.xlane.xlu0 %233
      %235 = vadd.xlane.f32.xlu0 %v226
      %v236 = vpop.xlane.xlu0 %235
      %v237 = vmul.f32 %v230, 0.0078125
      %v238 = vmul.f32 %v232, 0.0078125
      %v239 = vmul.f32 %v234, 0.0078125
      %v240 = vmul.f32 %v236, 0.0078125
      %v241 = vsub.f32 %v223, %v237
      %v242 = vsub.f32 %v224, %v238
      %v243 = vsub.f32 %v225, %v239
      %v244 = vsub.f32 %v226, %v240
      %v245 = vmul.f32 %v241, %v241
      %v246 = vmul.f32 %v242, %v242
      %v247 = vmul.f32 %v243, %v243
      %v248 = vmul.f32 %v244, %v244
      %249 = vadd.xlane.f32.xlu0 %v245
      %v250 = vpop.xlane.xlu0 %249
      %251 = vadd.xlane.f32.xlu0 %v246
      %v252 = vpop.xlane.xlu0 %251
      %253 = vadd.xlane.f32.xlu0 %v247
      %v254 = vpop.xlane.xlu0 %253
      %255 = vadd.xlane.f32.xlu0 %v248
      %v256 = vpop.xlane.xlu0 %255
      %v257 = vld [vmem:[#allocation2] sm:$0xff]
      %v258 = vld [vmem:[#allocation2 + $0x8] sm:$0xff]
      %v259 = vld [vmem:[#allocation2 + $0x10] sm:$0xff]
      %v260 = vld [vmem:[#allocation2 + $0x18] sm:$0xff]
      %s261 = sadd.f32 %s228, 128.0
      %v262 = vsub.f32 %v237, %v257
      %v263 = vsub.f32 %v238, %v258
      %v264 = vsub.f32 %v239, %v259
      %v265 = vsub.f32 %v240, %v260
      %v266 = vstv %s261
      %v267 = vrcp.pop %v266
      %s268 = vtos %v267
      %s269 = smul.f32 128.0, %s268
      %v270 = vstv %s269
      %v271 = vmul.f32 %v262, %v270
      %v272 = vmul.f32 %v263, %v270
      %v273 = vmul.f32 %v264, %v270
      %v274 = vmul.f32 %v265, %v270
      %v275 = vadd.f32 %v257, %v271
      %v276 = vadd.f32 %v258, %v272
      %v277 = vadd.f32 %v259, %v273
      %v278 = vadd.f32 %v260, %v274
      %v279 = vadd.f32 %v257, %v250
      %v280 = vadd.f32 %v258, %v252
      %v281 = vadd.f32 %v259, %v254
      %v282 = vadd.f32 %v260, %v256
      %v283 = vmul.f32 %v262, %v262
      %v284 = vmul.f32 %v263, %v263
      %v285 = vmul.f32 %v264, %v264
      %v286 = vmul.f32 %v265, %v265
      %s287 = smul.f32 %s228, 128.0
      %v288 = vstv %s261
      %v289 = vrcp.pop %v288
      %s290 = vtos %v289
      %s291 = smul.f32 %s287, %s290
      %v292 = vstv %s291
      %v293 = vmul.f32 %v283, %v292
      %v294 = vmul.f32 %v284, %v292
      %v295 = vmul.f32 %v285, %v292
      %v296 = vmul.f32 %v286, %v292
      %301 = vrot.lane.b32.xlu0 %v293, 1
      %v302 = vpop.permute.xlu0 %301
      %303 = vrot.lane.b32.xlu0 %v294, 1
      %v304 = vpop.permute.xlu0 %303
      %305 = vrot.lane.b32.xlu0 %v295, 1
      %v306 = vpop.permute.xlu0 %305
      %307 = vrot.lane.b32.xlu0 %v296, 1
      %v308 = vpop.permute.xlu0 %307
      %v313 = vadd.f32 %v279, %v302
      %v314 = vadd.f32 %v280, %v304
      %v315 = vadd.f32 %v281, %v306
      %v316 = vadd.f32 %v282, %v308
      %vm317 = vcmask 7168
      %318 = vst.msk [vmem:[#allocation2] sm:$0xff] %vm317, %v275
      %319 = vst.msk [vmem:[#allocation2 + $0x8] sm:$0xff] %vm317, %v276
      %320 = vst.msk [vmem:[#allocation2 + $0x10] sm:$0xff] %vm317, %v277
      %321 = vst.msk [vmem:[#allocation2 + $0x18] sm:$0xff] %vm317, %v278
      %vm322 = vcmask 15368
      %323 = vst.msk [vmem:[#allocation2] sm:$0xff] %vm322, %v313
      %324 = vst.msk [vmem:[#allocation2 + $0x8] sm:$0xff] %vm322, %v314
      %325 = vst.msk [vmem:[#allocation2 + $0x10] sm:$0xff] %vm322, %v315
      %326 = vst.msk [vmem:[#allocation2 + $0x18] sm:$0xff] %vm322, %v316
      %p327 = scmp.eq.s32.totalorder %s14, 1
      // Predicated region
      $region37: #{tpu_custom_call.1} parent=31 // pred_check
        %p328 = pneg %p327
      $region38: #{tpu_custom_call.1} parent=31 // pred_check_branch
        %330 = sbr.rel (%p328) target = $region40
      $region39: #{tpu_custom_call.1} parent=31 // pred_region
        %v331 = vmul.f32 %v313, 0.00390625
        %v332 = vmul.f32 %v314, 0.00390625
        %v333 = vmul.f32 %v315, 0.00390625
        %v334 = vmul.f32 %v316, 0.00390625
        %v335 = vld [vmem:[%s2] sm:$0xff]
        %v336 = vld [vmem:[%s2 + $0x8] sm:$0xff]
        %v337 = vld [vmem:[%s2 + $0x10] sm:$0xff]
        %v338 = vld [vmem:[%s2 + $0x18] sm:$0xff]
        %v339 = vadd.f32 %v331, 1e-05
        %v340 = vadd.f32 %v332, 1e-05
        %v341 = vadd.f32 %v333, 1e-05
        %v342 = vadd.f32 %v334, 1e-05
        %v343 = vrsqrt.pop %v339
        %v344 = vrsqrt.pop %v340
        %v345 = vrsqrt.pop %v341
        %v346 = vrsqrt.pop %v342
        %351 = vrot.lane.b32.xlu0 %v343, 1
        %v352 = vpop.permute.xlu0 %351
        %353 = vrot.lane.b32.xlu0 %v344, 1
        %v354 = vpop.permute.xlu0 %353
        %355 = vrot.lane.b32.xlu0 %v345, 1
        %v356 = vpop.permute.xlu0 %355
        %357 = vrot.lane.b32.xlu0 %v346, 1
        %v358 = vpop.permute.xlu0 %357
        %v363 = vmul.f32 %v335, %v352
        %v364 = vmul.f32 %v336, %v354
        %v365 = vmul.f32 %v337, %v356
        %v366 = vmul.f32 %v338, %v358
        %371 = vrot.lane.b32.xlu0 %v363, 126
        %v372 = vpop.permute.xlu0 %371
        %373 = vrot.lane.b32.xlu0 %v364, 126
        %v374 = vpop.permute.xlu0 %373
        %375 = vrot.lane.b32.xlu0 %v365, 126
        %v376 = vpop.permute.xlu0 %375
        %377 = vrot.lane.b32.xlu0 %v366, 126
        %v378 = vpop.permute.xlu0 %377
        %v383 = vmul.f32 %v275, %v372
        %v384 = vmul.f32 %v276, %v374
        %v385 = vmul.f32 %v277, %v376
        %v386 = vmul.f32 %v278, %v378
        %391 = vrot.lane.b32.xlu0 %v383, 3
        %v392 = vpop.permute.xlu0 %391
        %393 = vrot.lane.b32.xlu0 %v384, 3
        %v394 = vpop.permute.xlu0 %393
        %395 = vrot.lane.b32.xlu0 %v385, 3
        %v396 = vpop.permute.xlu0 %395
        %397 = vrot.lane.b32.xlu0 %v386, 3
        %v398 = vpop.permute.xlu0 %397
        %v403 = vsub.f32 %v335, %v392
        %v404 = vsub.f32 %v336, %v394
        %v405 = vsub.f32 %v337, %v396
        %v406 = vsub.f32 %v338, %v398
        %vm407 = vcmask 15360
        %408 = vst.msk [vmem:[%s3] sm:$0xff] %vm407, 0.0
        %409 = vst.msk [vmem:[%s3 + $0x8] sm:$0xff] %vm407, 0.0
        %410 = vst.msk [vmem:[%s3 + $0x10] sm:$0xff] %vm407, 0.0
        %411 = vst.msk [vmem:[%s3 + $0x18] sm:$0xff] %vm407, 0.0
        %412 = vst.msk [vmem:[%s3 + $0x20] sm:$0xff] %vm407, 0.0
        %413 = vst.msk [vmem:[%s3 + $0x28] sm:$0xff] %vm407, 0.0
        %414 = vst.msk [vmem:[%s3 + $0x30] sm:$0xff] %vm407, 0.0
        %415 = vst.msk [vmem:[%s3 + $0x38] sm:$0xff] %vm407, 0.0
        %416 = vst.msk [vmem:[%s3] sm:$0xff] %vm317, %v372
        %417 = vst.msk [vmem:[%s3 + $0x8] sm:$0xff] %vm317, %v374
        %418 = vst.msk [vmem:[%s3 + $0x10] sm:$0xff] %vm317, %v376
        %419 = vst.msk [vmem:[%s3 + $0x18] sm:$0xff] %vm317, %v378
        %424 = vrot.lane.b32.xlu0 %v403, 126
        %v425 = vpop.permute.xlu0 %424
        %426 = vrot.lane.b32.xlu0 %v404, 126
        %v427 = vpop.permute.xlu0 %426
        %428 = vrot.lane.b32.xlu0 %v405, 126
        %v429 = vpop.permute.xlu0 %428
        %430 = vrot.lane.b32.xlu0 %v406, 126
        %v431 = vpop.permute.xlu0 %430
        %436 = vst.msk [vmem:[%s3] sm:$0xff] %vm322, %v425
        %437 = vst.msk [vmem:[%s3 + $0x8] sm:$0xff] %vm322, %v427
        %438 = vst.msk [vmem:[%s3 + $0x10] sm:$0xff] %vm322, %v429
        %439 = vst.msk [vmem:[%s3 + $0x18] sm:$0xff] %vm322, %v431
      $region40: #{tpu_custom_call.1} parent=31 // pred_fallthru
        _
      // Predicated region
      $region41: #{tpu_custom_call.1} parent=31 // pred_check
        %p440 = pneg %p95
      $region42: #{tpu_custom_call.1} parent=31 // pred_check_branch
        %442 = sbr.rel (%p440) target = $region44
      $region43: #{tpu_custom_call.1} parent=31 // pred_region
        _
      $region44: #{tpu_custom_call.1} parent=31 // pred_fallthru
        _
      // Predicated region
      $region45: #{tpu_custom_call.1} parent=31 // pred_check
        %p443 = pneg %p95
      $region46: #{tpu_custom_call.1} parent=31 // pred_check_branch
        %445 = sbr.rel (%p443) target = $region48
      $region47: #{tpu_custom_call.1} parent=31 // pred_region
        _
      $region48: #{tpu_custom_call.1} parent=31 // pred_fallthru
        _
    $region32: #{tpu_custom_call.1} parent=5 // pred_fallthru
      _
    %p446 = scmp.le.s32.totalorder 2, %s9
    // Predicated region
    $region49: #{tpu_custom_call.1} parent=5 // pred_check
      %p447 = pneg %p446
    $region50: #{tpu_custom_call.1} parent=5 // pred_check_branch
      %449 = sbr.rel (%p447) target = $region52
    $region51: #{tpu_custom_call.1} parent=5 // pred_region
      %s450 = ssub.s32 %s9, 2
    $region52: #{tpu_custom_call.1} parent=5 // pred_fallthru
      _
  $region6: #{tpu_custom_call.1} parent=0 // loop_footer
    %s13 = sadd.s32 1, %s9
  $region7: #{tpu_custom_call.1} parent=0 // loop_footer_branch
    %8 = sbr.rel target = $region3
  $region8: #{tpu_custom_call.1} parent=0 // loop_exit
    _

</llo_original>
